<compile_context>
chip_gen: v7x
topology: tpu7x:2x2x1
jax: 0.10.0
libtpu: 0.0.40
codegen_flags: <defaults>
</compile_context>

<pallas_src>
import functools

import jax
import jax.numpy as jnp
from jax import lax
from jax.experimental import pallas as pl
from jax.experimental.pallas import tpu as pltpu

K = 7          # kernel_size
P = 3          # padding


def _round_up(a, b):
    return (a + b - 1) // b * b


def _sa_kernel(wmask_ref, x_ref, o_ref, maxacc_ref, pad_ref, *, H, W):
    # wmask_ref : VMEM (K*K, H*W) f32  per-tap weight * column-validity mask
    # x_ref     : VMEM (bn, ct, H*W)   lane-dense input block
    # o_ref     : VMEM (bn, 1, H*W)    lane-dense output block
    # maxacc_ref: VMEM (bn, H*W) f32   running channel-wise max
    # pad_ref   : VMEM (bn, Lp)  f32   row-padded flat max map for the conv
    bn = x_ref.shape[0]
    S = H * W
    c = pl.program_id(1)
    nc = pl.num_programs(1)

    @pl.when(c == 0)
    def _init():
        maxacc_ref[...] = jnp.full(maxacc_ref.shape, -jnp.inf, jnp.float32)

    # Channel-wise max over this channel tile: the only pass over the big tensor.
    tile_max = jnp.max(x_ref[...].astype(jnp.float32), axis=1)        # (bn, S)
    maxacc_ref[...] = jnp.maximum(maxacc_ref[...], tile_max)

    @pl.when(c == nc - 1)
    def _conv():
        Lp = pad_ref.shape[1]
        off0 = P * W + P          # start of the valid image inside the flat map

        # Zero only the two border strips (the interior is fully overwritten).
        pad_ref[:, :off0] = jnp.zeros((bn, off0), jnp.float32)
        pad_ref[:, off0 + S:] = jnp.zeros((bn, Lp - off0 - S), jnp.float32)
        pad_ref[:, off0:off0 + S] = maxacc_ref[...]
        mp = pad_ref[...]                                            # (bn, Lp)

        # 7x7 "same" conv as 49 lane-offset slices of the flat map.  Column
        # (width) zero-padding is folded into wmask; row (height) padding is
        # the zeroed strips above, so out-of-image taps contribute exactly 0
        # -- identical to conv2d zero padding.
        acc = jnp.zeros((bn, S), jnp.float32)
        for ki in range(K):
            for kj in range(K):
                t = ki * K + kj
                off = ki * W + kj
                acc = acc + wmask_ref[t:t + 1, :] * mp[:, off:off + S]

        o_ref[...] = jax.nn.sigmoid(acc)[:, None, :].astype(o_ref.dtype)


def spatial_attention(x, w):
    """x: (N, C, H, W).  w: (1, 1, K, K).  Returns sigmoid(conv7x7(max_c(x)))."""
    N, C, H, W = x.shape
    S = H * W
    Lp = (H + 2 * P) * W + 2 * P          # row-padded flat map + P margins each end
    itemsize = x.dtype.itemsize

    # ---- fold conv weights + width-direction zero padding into per-tap rows --
    w2d = w.reshape(K, K).astype(jnp.float32)
    col = jnp.arange(S, dtype=jnp.int32) % W
    rows = []
    for ki in range(K):
        for kj in range(K):
            cc = col + (kj - P)
            valid = (cc >= 0) & (cc < W)
            rows.append(jnp.where(valid, w2d[ki, kj], jnp.float32(0.0)))
    wmask = jnp.stack(rows)                                          # (K*K, S)

    # ---- generation-aware VMEM budget ----------------------------------------
    def _vmem_capacity():
        try:
            info = pltpu.get_tpu_info()
            for attr in ("vmem_capacity_bytes", "vmem_size_bytes", "vmem_bytes"):
                v = getattr(info, attr, None)
                if v:
                    return int(v)
        except Exception:
            pass
        return 64 << 20                    # conservative: v7x physical VMEM / TC
    cap = _vmem_capacity()
    budget = (cap * 3) // 4                # leave headroom for Mosaic scratch
    per_buf_target = budget // 3           # one (double-buffered) input buffer

    S_pad = _round_up(S, 128)
    sub = 8 * max(1, 4 // max(1, itemsize))      # sublane granule for x's dtype

    def x_block_bytes(bn_, ct_):
        return bn_ * _round_up(ct_, sub) * S_pad * itemsize

    # ---- channel tile: full C if it fits, else a multiple of 8 dividing C ----
    if x_block_bytes(1, C) <= per_buf_target or C <= 8:
        ct = C
    else:
        cands = [d for d in range(8, C, 8) if C % d == 0]
        fitting = [d for d in cands if x_block_bytes(1, d) <= per_buf_target]
        if fitting:
            ct = max(fitting)
        elif cands:
            ct = min(cands)
        else:
            ct = C   # TODO(synk): C has no multiple-of-8 divisor; cannot C-tile cleanly
    c_blocks = C // ct

    # ---- batch tile: fit VMEM; prefer >= ~8 grid steps (>=3-4 per v7x TC) with
    # DMAs >= ~2 MiB; for tiny problems fall back to >= 2 steps (one per TC) ---
    divs = [d for d in range(1, N + 1) if N % d == 0]
    fits = [d for d in divs if x_block_bytes(d, ct) <= per_buf_target] or [1]
    target_steps, min_block = 8, 2 << 20
    good = [d for d in fits
            if (N // d) * c_blocks >= target_steps
            and x_block_bytes(d, ct) >= min_block]
    if good:
        bn = max(good)
    else:
        bn = max(fits)
        if N >= 2 and (N // bn) * c_blocks < 2:
            bn = max(d for d in fits if d <= N // 2)
    grid = (N // bn, c_blocks)

    # ---- real (lane/sublane-padded) VMEM footprint for the compiler ----------
    out_block = bn * 8 * S_pad * itemsize                 # (bn,1,S) blocks
    wmask_block = _round_up(K * K, 8) * S_pad * 4
    maxacc_bytes = _round_up(bn, 8) * S_pad * 4
    pad_bytes = _round_up(bn, 8) * _round_up(Lp, 128) * 4
    vmem_need = (2 * x_block_bytes(bn, ct) + 2 * out_block + 2 * wmask_block
                 + maxacc_bytes + pad_bytes)
    vmem_limit = max(16 << 20, min(int(vmem_need) + (4 << 20), budget))
    vmem_limit = max(vmem_limit, int(vmem_need) + (1 << 20))   # never under-declare

    cost = pl.CostEstimate(
        flops=int(N * S * (C + 2 * K * K)),
        transcendentals=int(N * S),
        bytes_accessed=int(N * C * S * itemsize + N * S * itemsize + K * K * S * 4),
    )

    x_flat = x.reshape(N, C, S)            # free: contiguous relabel in HBM

    out_flat = pl.pallas_call(
        functools.partial(_sa_kernel, H=H, W=W),
        out_shape=jax.ShapeDtypeStruct((N, 1, S), x.dtype),
        grid_spec=pltpu.PrefetchScalarGridSpec(
            num_scalar_prefetch=0,
            grid=grid,
            in_specs=[
                pl.BlockSpec((K * K, S), lambda n, c: (0, 0)),      # wmask (constant index -> fetched once)
                pl.BlockSpec((bn, ct, S), lambda n, c: (n, c, 0)),  # x, lane-dense
            ],
            out_specs=pl.BlockSpec((bn, 1, S), lambda n, c: (n, 0, 0)),
            scratch_shapes=[
                pltpu.VMEM((bn, S), jnp.float32),     # running channel max
                pltpu.VMEM((bn, Lp), jnp.float32),    # row-padded flat map
            ],
        ),
        compiler_params=pltpu.CompilerParams(
            dimension_semantics=("parallel", "arbitrary"),
            vmem_limit_bytes=int(vmem_limit),
        ),
        cost_estimate=cost,
    )(wmask, x_flat)

    return out_flat.reshape(N, 1, H, W)


def _reference(x, w):
    """Pure-JAX reference matching the PyTorch forward."""
    max_out = jnp.max(x, axis=1, keepdims=True)                      # (N,1,H,W)
    y = lax.conv_general_dilated(
        max_out, w,
        window_strides=(1, 1),
        padding=((P, P), (P, P)),
        dimension_numbers=("NCHW", "OIHW", "NCHW"),
    )
    return jax.nn.sigmoid(y)


if __name__ == "__main__":
    key = jax.random.PRNGKey(0)
    kx, kw = jax.random.split(key)

    N, C, H, W = 2, 4, 16, 16
    x = jax.random.normal(kx, (N, C, H, W), dtype=jnp.float32)

    # nn.Conv2d(1, 1, 7, bias=False) default init: U(-1/sqrt(fan_in), +1/sqrt(fan_in))
    fan_in = 1 * K * K
    bound = 1.0 / (fan_in ** 0.5)
    w = jax.random.uniform(kw, (1, 1, K, K), jnp.float32, -bound, bound)

    out = spatial_attention(x, w)
    out = jax.block_until_ready(out)

    ref = _reference(x, w)
    assert out.shape == (N, 1, H, W)
    assert jnp.allclose(out, ref, atol=1e-5, rtol=1e-5), "mismatch vs reference"

    print("KERNEL_OK")
</pallas_src>

<mosaic_0001>
module attributes {stable_mosaic.version = 11 : i64} {
  func.func @_sa_kernel(%arg0: i32, %arg1: i32, %arg2: memref<49x256xf32, #tpu.memory_space<vmem>>, %arg3: memref<1x4x256xf32, #tpu.memory_space<vmem>>, %arg4: memref<1x1x256xf32, #tpu.memory_space<vmem>>, %arg5: memref<1x256xf32, #tpu.memory_space<vmem>>, %arg6: memref<1x358xf32, #tpu.memory_space<vmem>>) attributes {dimension_semantics = [#tpu.dimension_semantics<parallel>, #tpu.dimension_semantics<arbitrary>], iteration_bounds = array<i64: 2, 1>, scalar_prefetch = 0 : i64, scratch_operands = 2 : i64, tpu.core_type = #tpu.core_type<tc>, window_params = [{pipeline_mode = #tpu.pipeline_mode<synchronous>, transform_indices = @transform_0, window_bounds = array<i64: 49, 256>}, {transform_indices = @transform_1, window_bounds = array<i64: 1, 4, 256>}, {transform_indices = @transform_2, window_bounds = array<i64: 1, 1, 256>}]} {
    %c0_i32 = arith.constant 0 : i32
    %0 = arith.cmpi eq, %arg1, %c0_i32 : i32
    %1 = arith.extui %0 : i1 to i32
    %c0_i32_0 = arith.constant 0 : i32
    %2 = arith.cmpi ne, %1, %c0_i32_0 : i32
    scf.if %2 {
      %cst_9 = arith.constant 0xFF800000 : f32
      %11 = vector.broadcast %cst_9 : f32 to vector<1x256xf32>
      %c0_10 = arith.constant 0 : index
      %c0_11 = arith.constant 0 : index
      %12 = vector.load %arg5[%c0_10, %c0_11] : memref<1x256xf32, #tpu.memory_space<vmem>>, vector<1x256xf32>
      tpu.vector_store %arg5[%c0_10, %c0_11], %11 {strides = array<i32>} : memref<1x256xf32, #tpu.memory_space<vmem>>, vector<1x256xf32>,
    } else {
    }
    %c0 = arith.constant 0 : index
    %c0_1 = arith.constant 0 : index
    %c0_2 = arith.constant 0 : index
    %3 = vector.load %arg3[%c0, %c0_1, %c0_2] : memref<1x4x256xf32, #tpu.memory_space<vmem>>, vector<1x4x256xf32>
    %cst = arith.constant dense<0xFF800000> : vector<1x256xf32>
    %4 = vector.multi_reduction <maximumf>, %3, %cst [1] : vector<1x4x256xf32> to vector<1x256xf32>
    %c0_3 = arith.constant 0 : index
    %c0_4 = arith.constant 0 : index
    %5 = vector.load %arg5[%c0_3, %c0_4] : memref<1x256xf32, #tpu.memory_space<vmem>>, vector<1x256xf32>
    %6 = arith.maximumf %5, %4 : vector<1x256xf32>
    %c0_5 = arith.constant 0 : index
    %c0_6 = arith.constant 0 : index
    %7 = vector.load %arg5[%c0_5, %c0_6] : memref<1x256xf32, #tpu.memory_space<vmem>>, vector<1x256xf32>
    tpu.vector_store %arg5[%c0_5, %c0_6], %6 {strides = array<i32>} : memref<1x256xf32, #tpu.memory_space<vmem>>, vector<1x256xf32>,
    %c0_i32_7 = arith.constant 0 : i32
    %8 = arith.cmpi eq, %arg1, %c0_i32_7 : i32
    %9 = arith.extui %8 : i1 to i32
    %c0_i32_8 = arith.constant 0 : i32
    %10 = arith.cmpi ne, %9, %c0_i32_8 : i32
    scf.if %10 {
      %cst_9 = arith.constant 0.000000e+00 : f32
      %11 = vector.broadcast %cst_9 : f32 to vector<1x51xf32>
      %c0_10 = arith.constant 0 : index
      %c0_11 = arith.constant 0 : index
      %12 = vector.load %arg6[%c0_10, %c0_11] : memref<1x358xf32, #tpu.memory_space<vmem>>, vector<1x51xf32>
      tpu.vector_store %arg6[%c0_10, %c0_11], %11 {strides = array<i32>} : memref<1x358xf32, #tpu.memory_space<vmem>>, vector<1x51xf32>,
      %cst_12 = arith.constant 0.000000e+00 : f32
      %13 = vector.broadcast %cst_12 : f32 to vector<1x51xf32>
      %c0_13 = arith.constant 0 : index
      %c307 = arith.constant 307 : index
      %14 = vector.load %arg6[%c0_13, %c307] : memref<1x358xf32, #tpu.memory_space<vmem>>, vector<1x51xf32>
      tpu.vector_store %arg6[%c0_13, %c307], %13 {strides = array<i32>} : memref<1x358xf32, #tpu.memory_space<vmem>>, vector<1x51xf32>,
      %c0_14 = arith.constant 0 : index
      %c0_15 = arith.constant 0 : index
      %15 = vector.load %arg5[%c0_14, %c0_15] : memref<1x256xf32, #tpu.memory_space<vmem>>, vector<1x256xf32>
      %c0_16 = arith.constant 0 : index
      %c51 = arith.constant 51 : index
      %16 = vector.load %arg6[%c0_16, %c51] : memref<1x358xf32, #tpu.memory_space<vmem>>, vector<1x256xf32>
      tpu.vector_store %arg6[%c0_16, %c51], %15 {strides = array<i32>} : memref<1x358xf32, #tpu.memory_space<vmem>>, vector<1x256xf32>,
      %c0_17 = arith.constant 0 : index
      %c0_18 = arith.constant 0 : index
      %17 = vector.load %arg6[%c0_17, %c0_18] : memref<1x358xf32, #tpu.memory_space<vmem>>, vector<1x358xf32>
      %cst_19 = arith.constant 0.000000e+00 : f32
      %18 = vector.broadcast %cst_19 : f32 to vector<1x256xf32>
      %c0_20 = arith.constant 0 : index
      %c0_21 = arith.constant 0 : index
      %19 = vector.load %arg2[%c0_20, %c0_21] : memref<49x256xf32, #tpu.memory_space<vmem>>, vector<1x256xf32>
      %20 = vector.extract_strided_slice %17 {offsets = [0, 0], sizes = [1, 256], strides = [1, 1]} : vector<1x358xf32> to vector<1x256xf32>
      %21 = arith.mulf %19, %20 : vector<1x256xf32>
      %22 = arith.addf %18, %21 : vector<1x256xf32>
      %c1 = arith.constant 1 : index
      %c0_22 = arith.constant 0 : index
      %23 = vector.load %arg2[%c1, %c0_22] : memref<49x256xf32, #tpu.memory_space<vmem>>, vector<1x256xf32>
      %24 = vector.extract_strided_slice %17 {offsets = [0, 1], sizes = [1, 256], strides = [1, 1]} : vector<1x358xf32> to vector<1x256xf32>
      %25 = arith.mulf %23, %24 : vector<1x256xf32>
      %26 = arith.addf %22, %25 : vector<1x256xf32>
      %c2 = arith.constant 2 : index
      %c0_23 = arith.constant 0 : index
      %27 = vector.load %arg2[%c2, %c0_23] : memref<49x256xf32, #tpu.memory_space<vmem>>, vector<1x256xf32>
      %28 = vector.extract_strided_slice %17 {offsets = [0, 2], sizes = [1, 256], strides = [1, 1]} : vector<1x358xf32> to vector<1x256xf32>
      %29 = arith.mulf %27, %28 : vector<1x256xf32>
      %30 = arith.addf %26, %29 : vector<1x256xf32>
      %c3 = arith.constant 3 : index
      %c0_24 = arith.constant 0 : index
      %31 = vector.load %arg2[%c3, %c0_24] : memref<49x256xf32, #tpu.memory_space<vmem>>, vector<1x256xf32>
      %32 = vector.extract_strided_slice %17 {offsets = [0, 3], sizes = [1, 256], strides = [1, 1]} : vector<1x358xf32> to vector<1x256xf32>
      %33 = arith.mulf %31, %32 : vector<1x256xf32>
      %34 = arith.addf %30, %33 : vector<1x256xf32>
      %c4 = arith.constant 4 : index
      %c0_25 = arith.constant 0 : index
      %35 = vector.load %arg2[%c4, %c0_25] : memref<49x256xf32, #tpu.memory_space<vmem>>, vector<1x256xf32>
      %36 = vector.extract_strided_slice %17 {offsets = [0, 4], sizes = [1, 256], strides = [1, 1]} : vector<1x358xf32> to vector<1x256xf32>
      %37 = arith.mulf %35, %36 : vector<1x256xf32>
      %38 = arith.addf %34, %37 : vector<1x256xf32>
      %c5 = arith.constant 5 : index
      %c0_26 = arith.constant 0 : index
      %39 = vector.load %arg2[%c5, %c0_26] : memref<49x256xf32, #tpu.memory_space<vmem>>, vector<1x256xf32>
      %40 = vector.extract_strided_slice %17 {offsets = [0, 5], sizes = [1, 256], strides = [1, 1]} : vector<1x358xf32> to vector<1x256xf32>
      %41 = arith.mulf %39, %40 : vector<1x256xf32>
      %42 = arith.addf %38, %41 : vector<1x256xf32>
      %c6 = arith.constant 6 : index
      %c0_27 = arith.constant 0 : index
      %43 = vector.load %arg2[%c6, %c0_27] : memref<49x256xf32, #tpu.memory_space<vmem>>, vector<1x256xf32>
      %44 = vector.extract_strided_slice %17 {offsets = [0, 6], sizes = [1, 256], strides = [1, 1]} : vector<1x358xf32> to vector<1x256xf32>
      %45 = arith.mulf %43, %44 : vector<1x256xf32>
      %46 = arith.addf %42, %45 : vector<1x256xf32>
      %c7 = arith.constant 7 : index
      %c0_28 = arith.constant 0 : index
      %47 = vector.load %arg2[%c7, %c0_28] : memref<49x256xf32, #tpu.memory_space<vmem>>, vector<1x256xf32>
      %48 = vector.extract_strided_slice %17 {offsets = [0, 16], sizes = [1, 256], strides = [1, 1]} : vector<1x358xf32> to vector<1x256xf32>
      %49 = arith.mulf %47, %48 : vector<1x256xf32>
      %50 = arith.addf %46, %49 : vector<1x256xf32>
      %c8 = arith.constant 8 : index
      %c0_29 = arith.constant 0 : index
      %51 = vector.load %arg2[%c8, %c0_29] : memref<49x256xf32, #tpu.memory_space<vmem>>, vector<1x256xf32>
      %52 = vector.extract_strided_slice %17 {offsets = [0, 17], sizes = [1, 256], strides = [1, 1]} : vector<1x358xf32> to vector<1x256xf32>
      %53 = arith.mulf %51, %52 : vector<1x256xf32>
      %54 = arith.addf %50, %53 : vector<1x256xf32>
      %c9 = arith.constant 9 : index
      %c0_30 = arith.constant 0 : index
      %55 = vector.load %arg2[%c9, %c0_30] : memref<49x256xf32, #tpu.memory_space<vmem>>, vector<1x256xf32>
      %56 = vector.extract_strided_slice %17 {offsets = [0, 18], sizes = [1, 256], strides = [1, 1]} : vector<1x358xf32> to vector<1x256xf32>
      %57 = arith.mulf %55, %56 : vector<1x256xf32>
      %58 = arith.addf %54, %57 : vector<1x256xf32>
      %c10 = arith.constant 10 : index
      %c0_31 = arith.constant 0 : index
      %59 = vector.load %arg2[%c10, %c0_31] : memref<49x256xf32, #tpu.memory_space<vmem>>, vector<1x256xf32>
      %60 = vector.extract_strided_slice %17 {offsets = [0, 19], sizes = [1, 256], strides = [1, 1]} : vector<1x358xf32> to vector<1x256xf32>
      %61 = arith.mulf %59, %60 : vector<1x256xf32>
      %62 = arith.addf %58, %61 : vector<1x256xf32>
      %c11 = arith.constant 11 : index
      %c0_32 = arith.constant 0 : index
      %63 = vector.load %arg2[%c11, %c0_32] : memref<49x256xf32, #tpu.memory_space<vmem>>, vector<1x256xf32>
      %64 = vector.extract_strided_slice %17 {offsets = [0, 20], sizes = [1, 256], strides = [1, 1]} : vector<1x358xf32> to vector<1x256xf32>
      %65 = arith.mulf %63, %64 : vector<1x256xf32>
      %66 = arith.addf %62, %65 : vector<1x256xf32>
      %c12 = arith.constant 12 : index
      %c0_33 = arith.constant 0 : index
      %67 = vector.load %arg2[%c12, %c0_33] : memref<49x256xf32, #tpu.memory_space<vmem>>, vector<1x256xf32>
      %68 = vector.extract_strided_slice %17 {offsets = [0, 21], sizes = [1, 256], strides = [1, 1]} : vector<1x358xf32> to vector<1x256xf32>
      %69 = arith.mulf %67, %68 : vector<1x256xf32>
      %70 = arith.addf %66, %69 : vector<1x256xf32>
      %c13 = arith.constant 13 : index
      %c0_34 = arith.constant 0 : index
      %71 = vector.load %arg2[%c13, %c0_34] : memref<49x256xf32, #tpu.memory_space<vmem>>, vector<1x256xf32>
      %72 = vector.extract_strided_slice %17 {offsets = [0, 22], sizes = [1, 256], strides = [1, 1]} : vector<1x358xf32> to vector<1x256xf32>
      %73 = arith.mulf %71, %72 : vector<1x256xf32>
      %74 = arith.addf %70, %73 : vector<1x256xf32>
      %c14 = arith.constant 14 : index
      %c0_35 = arith.constant 0 : index
      %75 = vector.load %arg2[%c14, %c0_35] : memref<49x256xf32, #tpu.memory_space<vmem>>, vector<1x256xf32>
      %76 = vector.extract_strided_slice %17 {offsets = [0, 32], sizes = [1, 256], strides = [1, 1]} : vector<1x358xf32> to vector<1x256xf32>
      %77 = arith.mulf %75, %76 : vector<1x256xf32>
      %78 = arith.addf %74, %77 : vector<1x256xf32>
      %c15 = arith.constant 15 : index
      %c0_36 = arith.constant 0 : index
      %79 = vector.load %arg2[%c15, %c0_36] : memref<49x256xf32, #tpu.memory_space<vmem>>, vector<1x256xf32>
      %80 = vector.extract_strided_slice %17 {offsets = [0, 33], sizes = [1, 256], strides = [1, 1]} : vector<1x358xf32> to vector<1x256xf32>
      %81 = arith.mulf %79, %80 : vector<1x256xf32>
      %82 = arith.addf %78, %81 : vector<1x256xf32>
      %c16 = arith.constant 16 : index
      %c0_37 = arith.constant 0 : index
      %83 = vector.load %arg2[%c16, %c0_37] : memref<49x256xf32, #tpu.memory_space<vmem>>, vector<1x256xf32>
      %84 = vector.extract_strided_slice %17 {offsets = [0, 34], sizes = [1, 256], strides = [1, 1]} : vector<1x358xf32> to vector<1x256xf32>
      %85 = arith.mulf %83, %84 : vector<1x256xf32>
      %86 = arith.addf %82, %85 : vector<1x256xf32>
      %c17 = arith.constant 17 : index
      %c0_38 = arith.constant 0 : index
      %87 = vector.load %arg2[%c17, %c0_38] : memref<49x256xf32, #tpu.memory_space<vmem>>, vector<1x256xf32>
      %88 = vector.extract_strided_slice %17 {offsets = [0, 35], sizes = [1, 256], strides = [1, 1]} : vector<1x358xf32> to vector<1x256xf32>
      %89 = arith.mulf %87, %88 : vector<1x256xf32>
      %90 = arith.addf %86, %89 : vector<1x256xf32>
      %c18 = arith.constant 18 : index
      %c0_39 = arith.constant 0 : index
      %91 = vector.load %arg2[%c18, %c0_39] : memref<49x256xf32, #tpu.memory_space<vmem>>, vector<1x256xf32>
      %92 = vector.extract_strided_slice %17 {offsets = [0, 36], sizes = [1, 256], strides = [1, 1]} : vector<1x358xf32> to vector<1x256xf32>
      %93 = arith.mulf %91, %92 : vector<1x256xf32>
      %94 = arith.addf %90, %93 : vector<1x256xf32>
      %c19 = arith.constant 19 : index
      %c0_40 = arith.constant 0 : index
      %95 = vector.load %arg2[%c19, %c0_40] : memref<49x256xf32, #tpu.memory_space<vmem>>, vector<1x256xf32>
      %96 = vector.extract_strided_slice %17 {offsets = [0, 37], sizes = [1, 256], strides = [1, 1]} : vector<1x358xf32> to vector<1x256xf32>
      %97 = arith.mulf %95, %96 : vector<1x256xf32>
      %98 = arith.addf %94, %97 : vector<1x256xf32>
      %c20 = arith.constant 20 : index
      %c0_41 = arith.constant 0 : index
      %99 = vector.load %arg2[%c20, %c0_41] : memref<49x256xf32, #tpu.memory_space<vmem>>, vector<1x256xf32>
      %100 = vector.extract_strided_slice %17 {offsets = [0, 38], sizes = [1, 256], strides = [1, 1]} : vector<1x358xf32> to vector<1x256xf32>
      %101 = arith.mulf %99, %100 : vector<1x256xf32>
      %102 = arith.addf %98, %101 : vector<1x256xf32>
      %c21 = arith.constant 21 : index
      %c0_42 = arith.constant 0 : index
      %103 = vector.load %arg2[%c21, %c0_42] : memref<49x256xf32, #tpu.memory_space<vmem>>, vector<1x256xf32>
      %104 = vector.extract_strided_slice %17 {offsets = [0, 48], sizes = [1, 256], strides = [1, 1]} : vector<1x358xf32> to vector<1x256xf32>
      %105 = arith.mulf %103, %104 : vector<1x256xf32>
      %106 = arith.addf %102, %105 : vector<1x256xf32>
      %c22 = arith.constant 22 : index
      %c0_43 = arith.constant 0 : index
      %107 = vector.load %arg2[%c22, %c0_43] : memref<49x256xf32, #tpu.memory_space<vmem>>, vector<1x256xf32>
      %108 = vector.extract_strided_slice %17 {offsets = [0, 49], sizes = [1, 256], strides = [1, 1]} : vector<1x358xf32> to vector<1x256xf32>
      %109 = arith.mulf %107, %108 : vector<1x256xf32>
      %110 = arith.addf %106, %109 : vector<1x256xf32>
      %c23 = arith.constant 23 : index
      %c0_44 = arith.constant 0 : index
      %111 = vector.load %arg2[%c23, %c0_44] : memref<49x256xf32, #tpu.memory_space<vmem>>, vector<1x256xf32>
      %112 = vector.extract_strided_slice %17 {offsets = [0, 50], sizes = [1, 256], strides = [1, 1]} : vector<1x358xf32> to vector<1x256xf32>
      %113 = arith.mulf %111, %112 : vector<1x256xf32>
      %114 = arith.addf %110, %113 : vector<1x256xf32>
      %c24 = arith.constant 24 : index
      %c0_45 = arith.constant 0 : index
      %115 = vector.load %arg2[%c24, %c0_45] : memref<49x256xf32, #tpu.memory_space<vmem>>, vector<1x256xf32>
      %116 = vector.extract_strided_slice %17 {offsets = [0, 51], sizes = [1, 256], strides = [1, 1]} : vector<1x358xf32> to vector<1x256xf32>
      %117 = arith.mulf %115, %116 : vector<1x256xf32>
      %118 = arith.addf %114, %117 : vector<1x256xf32>
      %c25 = arith.constant 25 : index
      %c0_46 = arith.constant 0 : index
      %119 = vector.load %arg2[%c25, %c0_46] : memref<49x256xf32, #tpu.memory_space<vmem>>, vector<1x256xf32>
      %120 = vector.extract_strided_slice %17 {offsets = [0, 52], sizes = [1, 256], strides = [1, 1]} : vector<1x358xf32> to vector<1x256xf32>
      %121 = arith.mulf %119, %120 : vector<1x256xf32>
      %122 = arith.addf %118, %121 : vector<1x256xf32>
      %c26 = arith.constant 26 : index
      %c0_47 = arith.constant 0 : index
      %123 = vector.load %arg2[%c26, %c0_47] : memref<49x256xf32, #tpu.memory_space<vmem>>, vector<1x256xf32>
      %124 = vector.extract_strided_slice %17 {offsets = [0, 53], sizes = [1, 256], strides = [1, 1]} : vector<1x358xf32> to vector<1x256xf32>
      %125 = arith.mulf %123, %124 : vector<1x256xf32>
      %126 = arith.addf %122, %125 : vector<1x256xf32>
      %c27 = arith.constant 27 : index
      %c0_48 = arith.constant 0 : index
      %127 = vector.load %arg2[%c27, %c0_48] : memref<49x256xf32, #tpu.memory_space<vmem>>, vector<1x256xf32>
      %128 = vector.extract_strided_slice %17 {offsets = [0, 54], sizes = [1, 256], strides = [1, 1]} : vector<1x358xf32> to vector<1x256xf32>
      %129 = arith.mulf %127, %128 : vector<1x256xf32>
      %130 = arith.addf %126, %129 : vector<1x256xf32>
      %c28 = arith.constant 28 : index
      %c0_49 = arith.constant 0 : index
      %131 = vector.load %arg2[%c28, %c0_49] : memref<49x256xf32, #tpu.memory_space<vmem>>, vector<1x256xf32>
      %132 = vector.extract_strided_slice %17 {offsets = [0, 64], sizes = [1, 256], strides = [1, 1]} : vector<1x358xf32> to vector<1x256xf32>
      %133 = arith.mulf %131, %132 : vector<1x256xf32>
      %134 = arith.addf %130, %133 : vector<1x256xf32>
      %c29 = arith.constant 29 : index
      %c0_50 = arith.constant 0 : index
      %135 = vector.load %arg2[%c29, %c0_50] : memref<49x256xf32, #tpu.memory_space<vmem>>, vector<1x256xf32>
      %136 = vector.extract_strided_slice %17 {offsets = [0, 65], sizes = [1, 256], strides = [1, 1]} : vector<1x358xf32> to vector<1x256xf32>
      %137 = arith.mulf %135, %136 : vector<1x256xf32>
      %138 = arith.addf %134, %137 : vector<1x256xf32>
      %c30 = arith.constant 30 : index
      %c0_51 = arith.constant 0 : index
      %139 = vector.load %arg2[%c30, %c0_51] : memref<49x256xf32, #tpu.memory_space<vmem>>, vector<1x256xf32>
      %140 = vector.extract_strided_slice %17 {offsets = [0, 66], sizes = [1, 256], strides = [1, 1]} : vector<1x358xf32> to vector<1x256xf32>
      %141 = arith.mulf %139, %140 : vector<1x256xf32>
      %142 = arith.addf %138, %141 : vector<1x256xf32>
      %c31 = arith.constant 31 : index
      %c0_52 = arith.constant 0 : index
      %143 = vector.load %arg2[%c31, %c0_52] : memref<49x256xf32, #tpu.memory_space<vmem>>, vector<1x256xf32>
      %144 = vector.extract_strided_slice %17 {offsets = [0, 67], sizes = [1, 256], strides = [1, 1]} : vector<1x358xf32> to vector<1x256xf32>
      %145 = arith.mulf %143, %144 : vector<1x256xf32>
      %146 = arith.addf %142, %145 : vector<1x256xf32>
      %c32 = arith.constant 32 : index
      %c0_53 = arith.constant 0 : index
      %147 = vector.load %arg2[%c32, %c0_53] : memref<49x256xf32, #tpu.memory_space<vmem>>, vector<1x256xf32>
      %148 = vector.extract_strided_slice %17 {offsets = [0, 68], sizes = [1, 256], strides = [1, 1]} : vector<1x358xf32> to vector<1x256xf32>
      %149 = arith.mulf %147, %148 : vector<1x256xf32>
      %150 = arith.addf %146, %149 : vector<1x256xf32>
      %c33 = arith.constant 33 : index
      %c0_54 = arith.constant 0 : index
      %151 = vector.load %arg2[%c33, %c0_54] : memref<49x256xf32, #tpu.memory_space<vmem>>, vector<1x256xf32>
      %152 = vector.extract_strided_slice %17 {offsets = [0, 69], sizes = [1, 256], strides = [1, 1]} : vector<1x358xf32> to vector<1x256xf32>
      %153 = arith.mulf %151, %152 : vector<1x256xf32>
      %154 = arith.addf %150, %153 : vector<1x256xf32>
      %c34 = arith.constant 34 : index
      %c0_55 = arith.constant 0 : index
      %155 = vector.load %arg2[%c34, %c0_55] : memref<49x256xf32, #tpu.memory_space<vmem>>, vector<1x256xf32>
      %156 = vector.extract_strided_slice %17 {offsets = [0, 70], sizes = [1, 256], strides = [1, 1]} : vector<1x358xf32> to vector<1x256xf32>
      %157 = arith.mulf %155, %156 : vector<1x256xf32>
      %158 = arith.addf %154, %157 : vector<1x256xf32>
      %c35 = arith.constant 35 : index
      %c0_56 = arith.constant 0 : index
      %159 = vector.load %arg2[%c35, %c0_56] : memref<49x256xf32, #tpu.memory_space<vmem>>, vector<1x256xf32>
      %160 = vector.extract_strided_slice %17 {offsets = [0, 80], sizes = [1, 256], strides = [1, 1]} : vector<1x358xf32> to vector<1x256xf32>
      %161 = arith.mulf %159, %160 : vector<1x256xf32>
      %162 = arith.addf %158, %161 : vector<1x256xf32>
      %c36 = arith.constant 36 : index
      %c0_57 = arith.constant 0 : index
      %163 = vector.load %arg2[%c36, %c0_57] : memref<49x256xf32, #tpu.memory_space<vmem>>, vector<1x256xf32>
      %164 = vector.extract_strided_slice %17 {offsets = [0, 81], sizes = [1, 256], strides = [1, 1]} : vector<1x358xf32> to vector<1x256xf32>
      %165 = arith.mulf %163, %164 : vector<1x256xf32>
      %166 = arith.addf %162, %165 : vector<1x256xf32>
      %c37 = arith.constant 37 : index
      %c0_58 = arith.constant 0 : index
      %167 = vector.load %arg2[%c37, %c0_58] : memref<49x256xf32, #tpu.memory_space<vmem>>, vector<1x256xf32>
      %168 = vector.extract_strided_slice %17 {offsets = [0, 82], sizes = [1, 256], strides = [1, 1]} : vector<1x358xf32> to vector<1x256xf32>
      %169 = arith.mulf %167, %168 : vector<1x256xf32>
      %170 = arith.addf %166, %169 : vector<1x256xf32>
      %c38 = arith.constant 38 : index
      %c0_59 = arith.constant 0 : index
      %171 = vector.load %arg2[%c38, %c0_59] : memref<49x256xf32, #tpu.memory_space<vmem>>, vector<1x256xf32>
      %172 = vector.extract_strided_slice %17 {offsets = [0, 83], sizes = [1, 256], strides = [1, 1]} : vector<1x358xf32> to vector<1x256xf32>
      %173 = arith.mulf %171, %172 : vector<1x256xf32>
      %174 = arith.addf %170, %173 : vector<1x256xf32>
      %c39 = arith.constant 39 : index
      %c0_60 = arith.constant 0 : index
      %175 = vector.load %arg2[%c39, %c0_60] : memref<49x256xf32, #tpu.memory_space<vmem>>, vector<1x256xf32>
      %176 = vector.extract_strided_slice %17 {offsets = [0, 84], sizes = [1, 256], strides = [1, 1]} : vector<1x358xf32> to vector<1x256xf32>
      %177 = arith.mulf %175, %176 : vector<1x256xf32>
      %178 = arith.addf %174, %177 : vector<1x256xf32>
      %c40 = arith.constant 40 : index
      %c0_61 = arith.constant 0 : index
      %179 = vector.load %arg2[%c40, %c0_61] : memref<49x256xf32, #tpu.memory_space<vmem>>, vector<1x256xf32>
      %180 = vector.extract_strided_slice %17 {offsets = [0, 85], sizes = [1, 256], strides = [1, 1]} : vector<1x358xf32> to vector<1x256xf32>
      %181 = arith.mulf %179, %180 : vector<1x256xf32>
      %182 = arith.addf %178, %181 : vector<1x256xf32>
      %c41 = arith.constant 41 : index
      %c0_62 = arith.constant 0 : index
      %183 = vector.load %arg2[%c41, %c0_62] : memref<49x256xf32, #tpu.memory_space<vmem>>, vector<1x256xf32>
      %184 = vector.extract_strided_slice %17 {offsets = [0, 86], sizes = [1, 256], strides = [1, 1]} : vector<1x358xf32> to vector<1x256xf32>
      %185 = arith.mulf %183, %184 : vector<1x256xf32>
      %186 = arith.addf %182, %185 : vector<1x256xf32>
      %c42 = arith.constant 42 : index
      %c0_63 = arith.constant 0 : index
      %187 = vector.load %arg2[%c42, %c0_63] : memref<49x256xf32, #tpu.memory_space<vmem>>, vector<1x256xf32>
      %188 = vector.extract_strided_slice %17 {offsets = [0, 96], sizes = [1, 256], strides = [1, 1]} : vector<1x358xf32> to vector<1x256xf32>
      %189 = arith.mulf %187, %188 : vector<1x256xf32>
      %190 = arith.addf %186, %189 : vector<1x256xf32>
      %c43 = arith.constant 43 : index
      %c0_64 = arith.constant 0 : index
      %191 = vector.load %arg2[%c43, %c0_64] : memref<49x256xf32, #tpu.memory_space<vmem>>, vector<1x256xf32>
      %192 = vector.extract_strided_slice %17 {offsets = [0, 97], sizes = [1, 256], strides = [1, 1]} : vector<1x358xf32> to vector<1x256xf32>
      %193 = arith.mulf %191, %192 : vector<1x256xf32>
      %194 = arith.addf %190, %193 : vector<1x256xf32>
      %c44 = arith.constant 44 : index
      %c0_65 = arith.constant 0 : index
      %195 = vector.load %arg2[%c44, %c0_65] : memref<49x256xf32, #tpu.memory_space<vmem>>, vector<1x256xf32>
      %196 = vector.extract_strided_slice %17 {offsets = [0, 98], sizes = [1, 256], strides = [1, 1]} : vector<1x358xf32> to vector<1x256xf32>
      %197 = arith.mulf %195, %196 : vector<1x256xf32>
      %198 = arith.addf %194, %197 : vector<1x256xf32>
      %c45 = arith.constant 45 : index
      %c0_66 = arith.constant 0 : index
      %199 = vector.load %arg2[%c45, %c0_66] : memref<49x256xf32, #tpu.memory_space<vmem>>, vector<1x256xf32>
      %200 = vector.extract_strided_slice %17 {offsets = [0, 99], sizes = [1, 256], strides = [1, 1]} : vector<1x358xf32> to vector<1x256xf32>
      %201 = arith.mulf %199, %200 : vector<1x256xf32>
      %202 = arith.addf %198, %201 : vector<1x256xf32>
      %c46 = arith.constant 46 : index
      %c0_67 = arith.constant 0 : index
      %203 = vector.load %arg2[%c46, %c0_67] : memref<49x256xf32, #tpu.memory_space<vmem>>, vector<1x256xf32>
      %204 = vector.extract_strided_slice %17 {offsets = [0, 100], sizes = [1, 256], strides = [1, 1]} : vector<1x358xf32> to vector<1x256xf32>
      %205 = arith.mulf %203, %204 : vector<1x256xf32>
      %206 = arith.addf %202, %205 : vector<1x256xf32>
      %c47 = arith.constant 47 : index
      %c0_68 = arith.constant 0 : index
      %207 = vector.load %arg2[%c47, %c0_68] : memref<49x256xf32, #tpu.memory_space<vmem>>, vector<1x256xf32>
      %208 = vector.extract_strided_slice %17 {offsets = [0, 101], sizes = [1, 256], strides = [1, 1]} : vector<1x358xf32> to vector<1x256xf32>
      %209 = arith.mulf %207, %208 : vector<1x256xf32>
      %210 = arith.addf %206, %209 : vector<1x256xf32>
      %c48 = arith.constant 48 : index
      %c0_69 = arith.constant 0 : index
      %211 = vector.load %arg2[%c48, %c0_69] : memref<49x256xf32, #tpu.memory_space<vmem>>, vector<1x256xf32>
      %212 = vector.extract_strided_slice %17 {offsets = [0, 102], sizes = [1, 256], strides = [1, 1]} : vector<1x358xf32> to vector<1x256xf32>
      %213 = arith.mulf %211, %212 : vector<1x256xf32>
      %214 = arith.addf %210, %213 : vector<1x256xf32>
      %215 = arith.negf %214 : vector<1x256xf32>
      %216 = math.exp %215 : vector<1x256xf32>
      %cst_70 = arith.constant 1.000000e+00 : f32
      %217 = vector.broadcast %cst_70 : f32 to vector<1x256xf32>
      %218 = arith.addf %217, %216 : vector<1x256xf32>
      %219 = arith.divf %217, %218 : vector<1x256xf32>
      %220 = vector.shape_cast %219 : vector<1x256xf32> to vector<1x1x256xf32>
      %c0_71 = arith.constant 0 : index
      %c0_72 = arith.constant 0 : index
      %c0_73 = arith.constant 0 : index
      %221 = vector.load %arg4[%c0_71, %c0_72, %c0_73] : memref<1x1x256xf32, #tpu.memory_space<vmem>>, vector<1x1x256xf32>
      tpu.vector_store %arg4[%c0_71, %c0_72, %c0_73], %220 {strides = array<i32>} : memref<1x1x256xf32, #tpu.memory_space<vmem>>, vector<1x1x256xf32>,
    } else {
    }
    return
  }
  func.func @transform_0(%arg0: i32, %arg1: i32) -> (i32, i32) {
    %c0_i32 = arith.constant 0 : i32
    %c0_i32_0 = arith.constant 0 : i32
    %c0_i32_1 = arith.constant 0 : i32
    return %c0_i32, %c0_i32_0 : i32, i32
  }
  func.func @transform_1(%arg0: i32, %arg1: i32) -> (i32, i32, i32) {
    %c0_i32 = arith.constant 0 : i32
    %c0_i32_0 = arith.constant 0 : i32
    return %arg0, %arg1, %c0_i32 : i32, i32, i32
  }
  func.func @transform_2(%arg0: i32, %arg1: i32) -> (i32, i32, i32) {
    %c0_i32 = arith.constant 0 : i32
    %c0_i32_0 = arith.constant 0 : i32
    %c0_i32_1 = arith.constant 0 : i32
    return %arg0, %c0_i32, %c0_i32_0 : i32, i32, i32
  }
}

</mosaic_0001>

<llo_original>
// kernel: tpu_custom_call.1
$region0: #{tpu_custom_call.1}
  #allocation0 [shape = 'u32[]', space=smem, size = 0x4, offset = 0x4, fixed_abs, tag = 'smem constant byte address 0x4 - core index']
  #allocation1 [shape = 'u32[144,128]{1,0:T(1,128)}', space=vmem, size = 0x12000, scoped, tag = 'internal scratch']
  #allocation2 [shape = 'f32[1,256]{1,0:T(1,128)}', space=vmem, size = 0x400, scoped, tag = 'scratch operand']
  #allocation3 [shape = 'f32[1,358]{1,0:T(1,128)}', space=vmem, size = 0x600, scoped, tag = 'scratch operand']
  %s0 = inlined_call_operand.hbm [shape: f32[49,256], index: 0, kind: input, shape index: {}]
  %s1 = inlined_call_operand.hbm [shape: f32[2,4,256], index: 1, kind: input, shape index: {}]
  %s2 = inlined_call_operand.hbm [shape: f32[2,1,256], index: 2, kind: output, shape index: {}]
  %s3 = sld [smem:[#allocation0]]
  $region57: #{tpu_custom_call.1} parent=0
    _
  %s5 = ssub.s32 1, %s3
  %s6 = scalar_select 0, %s5, %s3
  $region1: #{tpu_custom_call.1} parent=0
    #allocation4 [shape = 'u8[57344]{0}', space=vmem, size = 0xe000, scoped, tag = 'input window, operand 0, single buffered']
    #allocation5 [shape = 's32[2]{0}', space=sflag, size = 0x8, scoped, tag = 'scoped memory for tpu_custom_call.1']
    #allocation6 [shape = 's32[2]{0}', space=sflag, size = 0x8, scoped, tag = 'scoped memory for tpu_custom_call.1']
    #allocation7 [shape = 'u8[8192]{0}', space=vmem, size = 0x2000, scoped, tag = 'input window, operand 1']
    #allocation8 [shape = 's32[2]{0}', space=sflag, size = 0x8, scoped, tag = 'scoped memory for tpu_custom_call.1']
    #allocation9 [shape = 'u8[2048]{0}', space=vmem, size = 0x800, scoped, tag = 'output window, operand 0']
    %7 = vsyncpa [#allocation5], 0
    %8 = vsyncpa [#allocation8], 0
    %s9 = scalar_lea.sflag [#allocation8], 1
    %10 = vsyncpa %s9, 0
    %11 = vsyncpa [#allocation6], 0
    %s12 = scalar_lea.sflag [#allocation6], 1
    %13 = vsyncpa %s12, 0
    loop: start=0, step=1, limit=4
    $region2: #{tpu_custom_call.1} parent=1 // loop_pre_header
      _
    $region3: #{tpu_custom_call.1} parent=1 // loop_header
      %s15 = sphi 0, %s19
      %p16 = scmp.ge.s32.totalorder %s15, 4
      %s22 = sphi 0, %s34
      %s23 = sphi 0, %s30
      %s24 = sphi 0, %s22
      %s25 = sphi 0, %s23
      %s26 = sphi 0, %s24
      %s27 = sphi 0, %s25
      %s35 = sphi 0, %s35
      %s37 = sphi 0, %s35
      %s38 = sphi 0, %s37
      %s52 = sphi 0, %s38
      %s60 = sphi 0, %s62
      %s63 = sphi 0, %s60
      %s64 = sphi 0, %s63
      %s80 = sphi 0, %s64
      %s86 = sphi 0, %s88
      %s89 = sphi 0, %s86
      %s90 = sphi 0, %s89
      %s106 = sphi 0, %s90
    $region4: #{tpu_custom_call.1} parent=1 // loop_header_branch
      %18 = sbr.rel (%p16) target = $region8
    $region5: #{tpu_custom_call.1} parent=1 // loop_body
      %s20 = ssub.s32 %s15, 1
      %s21 = ssub.s32 %s15, 2
      %s28 = sadd.s32 1, %s23
      %p29 = scmp.ge.s32.totalorder %s28, 1
      %s30 = scalar_select %p29, 0, %s28
      %s31 = sadd.s32 1, %s22
      %s32 = scalar_select %p29, %s31, %s22
      %p33 = scmp.ge.s32.totalorder %s32, 2
      %s34 = scalar_select %p33, 0, %s32
      %s36 = sadd.s32 %s35, 1
      %p39 = scmp.eq.s32.totalorder %s15, 1
      %p40 = scmp.ne.s32.totalorder %s35, %s37
      %p41 = scmp.eq.s32.totalorder %s15, 0
      %p42 = por %p40, %p41
      %p43 = scmp.ne.s32.totalorder %s35, %s37
      %p44 = scmp.eq.s32.totalorder %s20, 1
      %p45 = por %p43, %p44
      %p46 = scmp.ne.s32.totalorder %s37, %s38
      %p47 = scmp.eq.s32.totalorder %s20, 0
      %p48 = por %p46, %p47
      %p49 = scmp.ne.s32.totalorder %s37, %s38
      %p50 = scmp.eq.s32.totalorder %s21, 1
      %p51 = por %p49, %p50
      %p53 = scmp.ne.s32.totalorder %s38, %s52
      %p54 = scmp.eq.s32.totalorder %s21, 0
      %p55 = por %p53, %p54
      %s56 = ssub.s32 %s22, %s34
      %s57 = ssub.s32 %s23, %s30
      %s58 = sor.u32 %s56, %s57
      %p59 = scmp.eq.s32.totalorder %s58, 0
      %s61 = sadd.s32 %s60, 1
      %s62 = scalar_select %p59, %s60, %s61
      %p65 = pneg %p59
      %p66 = scmp.eq.s32.totalorder %s15, 1
      %p67 = por %p65, %p66
      %p68 = scmp.ne.s32.totalorder %s60, %s63
      %p69 = scmp.eq.s32.totalorder %s15, 0
      %p70 = por %p68, %p69
      %p71 = scmp.ne.s32.totalorder %s60, %s63
      %p72 = scmp.eq.s32.totalorder %s20, 1
      %p73 = por %p71, %p72
      %p74 = scmp.ne.s32.totalorder %s63, %s64
      %p75 = scmp.eq.s32.totalorder %s20, 0
      %p76 = por %p74, %p75
      %p77 = scmp.ne.s32.totalorder %s63, %s64
      %p78 = scmp.eq.s32.totalorder %s21, 1
      %p79 = por %p77, %p78
      %p81 = scmp.ne.s32.totalorder %s64, %s80
      %p82 = scmp.eq.s32.totalorder %s21, 0
      %p83 = por %p81, %p82
      %s84 = ssub.s32 %s22, %s34
      %p85 = scmp.eq.s32.totalorder %s84, 0
      %s87 = sadd.s32 %s86, 1
      %s88 = scalar_select %p85, %s86, %s87
      %p91 = pneg %p85
      %p92 = scmp.eq.s32.totalorder %s15, 1
      %p93 = por %p91, %p92
      %p94 = scmp.ne.s32.totalorder %s86, %s89
      %p95 = scmp.eq.s32.totalorder %s15, 0
      %p96 = por %p94, %p95
      %p97 = scmp.ne.s32.totalorder %s86, %s89
      %p98 = scmp.eq.s32.totalorder %s20, 1
      %p99 = por %p97, %p98
      %p100 = scmp.ne.s32.totalorder %s89, %s90
      %p101 = scmp.eq.s32.totalorder %s20, 0
      %p102 = por %p100, %p101
      %p103 = scmp.ne.s32.totalorder %s89, %s90
      %p104 = scmp.eq.s32.totalorder %s21, 1
      %p105 = por %p103, %p104
      %p107 = scmp.ne.s32.totalorder %s90, %s106
      %p108 = scmp.eq.s32.totalorder %s21, 0
      %p109 = por %p107, %p108
      %p110 = scmp.le.s32.totalorder 1, %s15
      %p111 = scmp.lt.s32.totalorder %s15, 3
      %p112 = pnand %p110, %p111
      %p113 = pneg %p112
      // Predicated region
      $region9: #{tpu_custom_call.1} parent=5 // pred_check
        _
      $region10: #{tpu_custom_call.1} parent=5 // pred_check_branch
        %115 = sbr.rel (%p112) target = $region12
      $region11: #{tpu_custom_call.1} parent=5 // pred_region
        %s116 = ssub.s32 %s15, 1
        // Predicated region
        $region13: #{tpu_custom_call.1} parent=11 // pred_check
          %p117 = pneg %p48
        $region14: #{tpu_custom_call.1} parent=11 // pred_check_branch
          %119 = sbr.rel (%p117) target = $region16
        $region15: #{tpu_custom_call.1} parent=11 // pred_region
          %s121 = ssub.s32 1792, 1792
          %122 = vsyncadd [#allocation5], %s121
          %s123 = sshll.u32 [#allocation4], 4
          %s124 = int_to_ptr.vmem [resolvable:$true] %s123
          %129 = dma.hbm_to_vmem [thread:$0]  %s0, 1792, %s124, [#allocation5], 256, 256, 16
        $region16: #{tpu_custom_call.1} parent=11 // pred_fallthru
          _
      $region12: #{tpu_custom_call.1} parent=5 // pred_fallthru
        _
      %p130 = scmp.lt.s32.totalorder %s15, 2
      // Predicated region
      $region17: #{tpu_custom_call.1} parent=5 // pred_check
        %p131 = pneg %p130
      $region18: #{tpu_custom_call.1} parent=5 // pred_check_branch
        %133 = sbr.rel (%p131) target = $region20
      $region19: #{tpu_custom_call.1} parent=5 // pred_region
        // Predicated region
        $region21: #{tpu_custom_call.1} parent=19 // pred_check
          %p134 = pneg %p70
        $region22: #{tpu_custom_call.1} parent=19 // pred_check_branch
          %136 = sbr.rel (%p134) target = $region24
        $region23: #{tpu_custom_call.1} parent=19 // pred_region
          %s137 = sand.u32 %s60, 1
          %s138 = scalar_lea.sflag [#allocation8], %s137
          %s139 = sand.u32 %s60, 1
          %s140 = smul.addr %s139, 8
          %s141 = scalar_lea.vmem [#allocation7], %s140
          %s143 = ssub.s32 128, 128
          %144 = vsyncadd %s138, %s143
          %s145 = smul.addr %s23, 2
          %s146 = smul.addr %s22, 2
          %s147 = sadd.s32 %s145, %s146
          %s148 = smul.addr %s147, 64
          %s149 = scalar_lea.hbm %s1, %s148
          %s151 = sshll.u32 %s141, 4
          %s152 = int_to_ptr.vmem [resolvable:$true] %s151
          %154 = dma.hbm_to_vmem [thread:$0]  %s149, 128, %s152, %s138
        $region24: #{tpu_custom_call.1} parent=19 // pred_fallthru
          _
      $region20: #{tpu_custom_call.1} parent=5 // pred_fallthru
        _
      %p155 = scmp.le.s32.totalorder 1, %s15
      %p156 = scmp.lt.s32.totalorder %s15, 3
      %p157 = pnand %p155, %p156
      %p158 = pneg %p157
      // Predicated region
      $region25: #{tpu_custom_call.1} parent=5 // pred_check
        _
      $region26: #{tpu_custom_call.1} parent=5 // pred_check_branch
        %160 = sbr.rel (%p157) target = $region28
      $region27: #{tpu_custom_call.1} parent=5 // pred_region
        %s161 = ssub.s32 %s15, 1
        // Predicated region
        $region29: #{tpu_custom_call.1} parent=27 // pred_check
          %p162 = pneg %p48
        $region30: #{tpu_custom_call.1} parent=27 // pred_check_branch
          %164 = sbr.rel (%p162) target = $region32
        $region31: #{tpu_custom_call.1} parent=27 // pred_region
          %165 = dma.done [#allocation5], 1792
        $region32: #{tpu_custom_call.1} parent=27 // pred_fallthru
          _
        %s166 = sand.u32 %s63, 1
        %s167 = scalar_lea.sflag [#allocation8], %s166
        %s168 = sand.u32 %s63, 1
        %s169 = smul.addr %s168, 8
        %s170 = scalar_lea.vmem [#allocation7], %s169
        // Predicated region
        $region33: #{tpu_custom_call.1} parent=27 // pred_check
          %p171 = pneg %p76
        $region34: #{tpu_custom_call.1} parent=27 // pred_check_branch
          %173 = sbr.rel (%p171) target = $region36
        $region35: #{tpu_custom_call.1} parent=27 // pred_region
          %174 = dma.done %s167, 128
        $region36: #{tpu_custom_call.1} parent=27 // pred_fallthru
          _
        %p175 = pneg %p48
        %p176 = pneg %p45
        %s177 = sand.u32 %s63, 1
        %s178 = scalar_lea.sflag [#allocation8], %s177
        %s179 = sand.u32 %s63, 1
        %s180 = smul.addr %s179, 8
        %s181 = scalar_lea.vmem [#allocation7], %s180
        %p182 = pneg %p76
        %p183 = pneg %p73
        %p184 = pneg %p102
        %p185 = pneg %p99
        %s186 = sand.u32 %s89, 1
        %s187 = scalar_lea.sflag [#allocation6], %s186
        %s188 = sand.u32 %s89, 1
        %s189 = smul.addr %s188, 2
        %s190 = scalar_lea.vmem [#allocation9], %s189
        %p191 = scmp.eq.s32.totalorder %s25, 0
        // Predicated region
        $region37: #{tpu_custom_call.1} parent=27 // pred_check
          %p192 = pneg %p191
        $region38: #{tpu_custom_call.1} parent=27 // pred_check_branch
          %194 = sbr.rel (%p192) target = $region40
        $region39: #{tpu_custom_call.1} parent=27 // pred_region
          %v195 = vlaneseq
          %vm196 = vcmp.ge.s32.totalorder %v195, 0
          %vm197 = vcmp.lt.s32.totalorder %v195, 256
          %vm198 = vmand %vm196, %vm197
          %199 = vst.msk [vmem:[#allocation2] sm:$0x3] %vm198, -inf
        $region40: #{tpu_custom_call.1} parent=27 // pred_fallthru
          _
        %v200 = vld [vmem:[%s170] sm:$0xff]
        %v202 = vcombine.high %v200, %v200
        %vm204 = vcmask 1043456
        %v205 = vsel %vm204, %v200, -inf
        %v206 = vrot.slane %v205, 4
        %v207 = vmax.f32 %v205, %v206
        %v208 = vrot.slane %v207, 2
        %v209 = vmax.f32 %v207, %v208
        %v210 = vrot.slane %v209, 1
        %v211 = vmax.f32 %v209, %v210
        %v212 = vsel %vm204, %v202, -inf
        %v213 = vrot.slane %v212, 4
        %v214 = vmax.f32 %v212, %v213
        %v215 = vrot.slane %v214, 2
        %v216 = vmax.f32 %v214, %v215
        %v217 = vrot.slane %v216, 1
        %v218 = vmax.f32 %v216, %v217
        %v219 = vld [vmem:[#allocation2] sm:$0x3]
        %v222 = vcombine.low %v211, %v218
        %v224 = vunpack.c.l.s4 1966171168
        %v225 = vunpack.c.0.s8 %v224
        %v226 = vlaneseq
        %v227 = vshrl.u32 %v226, 7
        %v228 = vsub.s32 %v225, %v227
        %v229 = vrot.slane %v222, %v228
        %v231 = vunpack.c.l.s4 1966171168
        %v232 = vunpack.c.0.s8 %v231
        %v233 = vlaneseq
        %v234 = vshrl.u32 %v233, 7
        %v235 = vsub.s32 %v232, %v234
        %v236 = vrot.slane %v229, %v235
        %v238 = vmax.f32 %v219, %v236
        %v239 = vlaneseq
        %vm240 = vcmp.ge.s32.totalorder %v239, 0
        %vm241 = vcmp.lt.s32.totalorder %v239, 256
        %vm242 = vmand %vm240, %vm241
        %243 = vst.msk [vmem:[#allocation2] sm:$0x3] %vm242, %v238
        // Predicated region
        $region41: #{tpu_custom_call.1} parent=27 // pred_check
          %p244 = pneg %p191
        $region42: #{tpu_custom_call.1} parent=27 // pred_check_branch
          %246 = sbr.rel (%p244) target = $region44
        $region43: #{tpu_custom_call.1} parent=27 // pred_region
          %vm247 = vcmp.lt.s32.totalorder %v239, 51
          %vm248 = vmand %vm240, %vm247
          %249 = vst.msk [vmem:[#allocation3] sm:$0x1] %vm248, 0.0
          %vm250 = vcmp.ge.s32.totalorder %v239, 51
          %vm251 = vcmp.lt.s32.totalorder %v239, 102
          %vm252 = vmand %vm250, %vm251
          %253 = vst.msk [vmem:[#allocation3 + $0x2] sm:$0x1] %vm252, 0.0
          %v254 = vld [vmem:[#allocation2] sm:$0x3]
          %256 = vrot.lane.b32.xlu0 %v254, 51
          %v257 = vpop.permute.xlu0 %256
          %v258 = vrot.slane %v257, 7
          %vm259 = vcmask 416768
          %v260 = vsel %vm259, %v258, %v257
          %vm262 = vcmp.lt.s32.totalorder %v239, 307
          %vm263 = vmand %vm250, %vm262
          %264 = vst.msk [vmem:[#allocation3] sm:$0x7] %vm263, %v260
          %v265 = vld [vmem:[#allocation3] sm:$0x7]
          %v266 = vld [vmem:[#allocation4] ss:$8 sm:$0x3]
          %v267 = vmul.f32 %v266, %v265
          %v268 = vadd.f32 %v267, 0.0
          %s269 = scalar_lea.vmem [#allocation4], 1
          %v270 = vld [vmem:[%s269] ss:$8 sm:$0x3]
          %272 = vrot.lane.b32.xlu0 %v265, 127
          %v273 = vpop.permute.xlu0 %272
          %v274 = vrot.slane %v273, 1
          %vm275 = vcmask 1039360
          %v276 = vsel %vm275, %v273, %v274
          %v278 = vmul.f32 %v270, %v276
          %v279 = vadd.f32 %v268, %v278
          %s280 = scalar_lea.vmem [#allocation4], 2
          %v281 = vld [vmem:[%s280] ss:$8 sm:$0x3]
          %282 = vrot.lane.b32.xlu0 %v265, 126
          %v283 = vpop.permute.xlu0 %282
          %v284 = vrot.slane %v283, 1
          %vm285 = vcmask 1031168
          %v286 = vsel %vm285, %v283, %v284
          %v288 = vmul.f32 %v281, %v286
          %v289 = vadd.f32 %v279, %v288
          %s290 = scalar_lea.vmem [#allocation4], 3
          %v291 = vld [vmem:[%s290] ss:$8 sm:$0x3]
          %292 = vrot.lane.b32.xlu0 %v265, 125
          %v293 = vpop.permute.xlu0 %292
          %v294 = vrot.slane %v293, 1
          %vm295 = vcmask 1022976
          %v296 = vsel %vm295, %v293, %v294
          %v298 = vmul.f32 %v291, %v296
          %v299 = vadd.f32 %v289, %v298
          %s300 = scalar_lea.vmem [#allocation4], 4
          %v301 = vld [vmem:[%s300] ss:$8 sm:$0x3]
          %302 = vrot.lane.b32.xlu0 %v265, 124
          %v303 = vpop.permute.xlu0 %302
          %v304 = vrot.slane %v303, 1
          %vm305 = vcmask 1014784
          %v306 = vsel %vm305, %v303, %v304
          %v308 = vmul.f32 %v301, %v306
          %v309 = vadd.f32 %v299, %v308
          %s310 = scalar_lea.vmem [#allocation4], 5
          %v311 = vld [vmem:[%s310] ss:$8 sm:$0x3]
          %312 = vrot.lane.b32.xlu0 %v265, 123
          %v313 = vpop.permute.xlu0 %312
          %v314 = vrot.slane %v313, 1
          %vm315 = vcmask 1006592
          %v316 = vsel %vm315, %v313, %v314
          %v318 = vmul.f32 %v311, %v316
          %v319 = vadd.f32 %v309, %v318
          %s320 = scalar_lea.vmem [#allocation4], 6
          %v321 = vld [vmem:[%s320] ss:$8 sm:$0x3]
          %322 = vrot.lane.b32.xlu0 %v265, 122
          %v323 = vpop.permute.xlu0 %322
          %v324 = vrot.slane %v323, 1
          %vm325 = vcmask 998400
          %v326 = vsel %vm325, %v323, %v324
          %v328 = vmul.f32 %v321, %v326
          %v329 = vadd.f32 %v319, %v328
          %s330 = scalar_lea.vmem [#allocation4], 7
          %v331 = vld [vmem:[%s330] ss:$8 sm:$0x3]
          %332 = vrot.lane.b32.xlu0 %v265, 112
          %v333 = vpop.permute.xlu0 %332
          %v334 = vrot.slane %v333, 1
          %vm335 = vcmask 916480
          %v336 = vsel %vm335, %v333, %v334
          %v338 = vmul.f32 %v331, %v336
          %v339 = vadd.f32 %v329, %v338
          %s340 = scalar_lea.vmem [#allocation4], 16
          %v341 = vld [vmem:[%s340] ss:$8 sm:$0x3]
          %342 = vrot.lane.b32.xlu0 %v265, 111
          %v343 = vpop.permute.xlu0 %342
          %v344 = vrot.slane %v343, 1
          %vm345 = vcmask 908288
          %v346 = vsel %vm345, %v343, %v344
          %v348 = vmul.f32 %v341, %v346
          %v349 = vadd.f32 %v339, %v348
          %s350 = scalar_lea.vmem [#allocation4], 17
          %v351 = vld [vmem:[%s350] ss:$8 sm:$0x3]
          %352 = vrot.lane.b32.xlu0 %v265, 110
          %v353 = vpop.permute.xlu0 %352
          %v354 = vrot.slane %v353, 1
          %vm355 = vcmask 900096
          %v356 = vsel %vm355, %v353, %v354
          %v358 = vmul.f32 %v351, %v356
          %v359 = vadd.f32 %v349, %v358
          %s360 = scalar_lea.vmem [#allocation4], 18
          %v361 = vld [vmem:[%s360] ss:$8 sm:$0x3]
          %362 = vrot.lane.b32.xlu0 %v265, 109
          %v363 = vpop.permute.xlu0 %362
          %v364 = vrot.slane %v363, 1
          %vm365 = vcmask 891904
          %v366 = vsel %vm365, %v363, %v364
          %v368 = vmul.f32 %v361, %v366
          %v369 = vadd.f32 %v359, %v368
          %s370 = scalar_lea.vmem [#allocation4], 19
          %v371 = vld [vmem:[%s370] ss:$8 sm:$0x3]
          %372 = vrot.lane.b32.xlu0 %v265, 108
          %v373 = vpop.permute.xlu0 %372
          %v374 = vrot.slane %v373, 1
          %vm375 = vcmask 883712
          %v376 = vsel %vm375, %v373, %v374
          %v378 = vmul.f32 %v371, %v376
          %v379 = vadd.f32 %v369, %v378
          %s380 = scalar_lea.vmem [#allocation4], 20
          %v381 = vld [vmem:[%s380] ss:$8 sm:$0x3]
          %382 = vrot.lane.b32.xlu0 %v265, 107
          %v383 = vpop.permute.xlu0 %382
          %v384 = vrot.slane %v383, 1
          %vm385 = vcmask 875520
          %v386 = vsel %vm385, %v383, %v384
          %v388 = vmul.f32 %v381, %v386
          %v389 = vadd.f32 %v379, %v388
          %s390 = scalar_lea.vmem [#allocation4], 21
          %v391 = vld [vmem:[%s390] ss:$8 sm:$0x3]
          %392 = vrot.lane.b32.xlu0 %v265, 106
          %v393 = vpop.permute.xlu0 %392
          %v394 = vrot.slane %v393, 1
          %vm395 = vcmask 867328
          %v396 = vsel %vm395, %v393, %v394
          %v398 = vmul.f32 %v391, %v396
          %v399 = vadd.f32 %v389, %v398
          %s400 = scalar_lea.vmem [#allocation4], 22
          %v401 = vld [vmem:[%s400] ss:$8 sm:$0x3]
          %402 = vrot.lane.b32.xlu0 %v265, 96
          %v403 = vpop.permute.xlu0 %402
          %v404 = vrot.slane %v403, 1
          %vm405 = vcmask 785408
          %v406 = vsel %vm405, %v403, %v404
          %v408 = vmul.f32 %v401, %v406
          %v409 = vadd.f32 %v399, %v408
          %s410 = scalar_lea.vmem [#allocation4], 23
          %v411 = vld [vmem:[%s410] ss:$8 sm:$0x3]
          %412 = vrot.lane.b32.xlu0 %v265, 95
          %v413 = vpop.permute.xlu0 %412
          %v414 = vrot.slane %v413, 1
          %vm415 = vcmask 777216
          %v416 = vsel %vm415, %v413, %v414
          %v418 = vmul.f32 %v411, %v416
          %v419 = vadd.f32 %v409, %v418
          %s420 = scalar_lea.vmem [#allocation4], 32
          %v421 = vld [vmem:[%s420] ss:$8 sm:$0x3]
          %422 = vrot.lane.b32.xlu0 %v265, 94
          %v423 = vpop.permute.xlu0 %422
          %v424 = vrot.slane %v423, 1
          %vm425 = vcmask 769024
          %v426 = vsel %vm425, %v423, %v424
          %v428 = vmul.f32 %v421, %v426
          %v429 = vadd.f32 %v419, %v428
          %s430 = scalar_lea.vmem [#allocation4], 33
          %v431 = vld [vmem:[%s430] ss:$8 sm:$0x3]
          %432 = vrot.lane.b32.xlu0 %v265, 93
          %v433 = vpop.permute.xlu0 %432
          %v434 = vrot.slane %v433, 1
          %vm435 = vcmask 760832
          %v436 = vsel %vm435, %v433, %v434
          %v438 = vmul.f32 %v431, %v436
          %v439 = vadd.f32 %v429, %v438
          %s440 = scalar_lea.vmem [#allocation4], 34
          %v441 = vld [vmem:[%s440] ss:$8 sm:$0x3]
          %442 = vrot.lane.b32.xlu0 %v265, 92
          %v443 = vpop.permute.xlu0 %442
          %v444 = vrot.slane %v443, 1
          %vm445 = vcmask 752640
          %v446 = vsel %vm445, %v443, %v444
          %v448 = vmul.f32 %v441, %v446
          %v449 = vadd.f32 %v439, %v448
          %s450 = scalar_lea.vmem [#allocation4], 35
          %v451 = vld [vmem:[%s450] ss:$8 sm:$0x3]
          %452 = vrot.lane.b32.xlu0 %v265, 91
          %v453 = vpop.permute.xlu0 %452
          %v454 = vrot.slane %v453, 1
          %vm455 = vcmask 744448
          %v456 = vsel %vm455, %v453, %v454
          %v458 = vmul.f32 %v451, %v456
          %v459 = vadd.f32 %v449, %v458
          %s460 = scalar_lea.vmem [#allocation4], 36
          %v461 = vld [vmem:[%s460] ss:$8 sm:$0x3]
          %462 = vrot.lane.b32.xlu0 %v265, 90
          %v463 = vpop.permute.xlu0 %462
          %v464 = vrot.slane %v463, 1
          %vm465 = vcmask 736256
          %v466 = vsel %vm465, %v463, %v464
          %v468 = vmul.f32 %v461, %v466
          %v469 = vadd.f32 %v459, %v468
          %s470 = scalar_lea.vmem [#allocation4], 37
          %v471 = vld [vmem:[%s470] ss:$8 sm:$0x3]
          %472 = vrot.lane.b32.xlu0 %v265, 80
          %v473 = vpop.permute.xlu0 %472
          %v474 = vrot.slane %v473, 1
          %vm475 = vcmask 654336
          %v476 = vsel %vm475, %v473, %v474
          %v478 = vmul.f32 %v471, %v476
          %v479 = vadd.f32 %v469, %v478
          %s480 = scalar_lea.vmem [#allocation4], 38
          %v481 = vld [vmem:[%s480] ss:$8 sm:$0x3]
          %482 = vrot.lane.b32.xlu0 %v265, 79
          %v483 = vpop.permute.xlu0 %482
          %v484 = vrot.slane %v483, 1
          %vm485 = vcmask 646144
          %v486 = vsel %vm485, %v483, %v484
          %v488 = vmul.f32 %v481, %v486
          %v489 = vadd.f32 %v479, %v488
          %s490 = scalar_lea.vmem [#allocation4], 39
          %v491 = vld [vmem:[%s490] ss:$8 sm:$0x3]
          %492 = vrot.lane.b32.xlu0 %v265, 78
          %v493 = vpop.permute.xlu0 %492
          %v494 = vrot.slane %v493, 1
          %vm495 = vcmask 637952
          %v496 = vsel %vm495, %v493, %v494
          %v498 = vmul.f32 %v491, %v496
          %v499 = vadd.f32 %v489, %v498
          %s500 = scalar_lea.vmem [#allocation4], 48
          %v501 = vld [vmem:[%s500] ss:$8 sm:$0x3]
          %502 = vrot.lane.b32.xlu0 %v265, 77
          %v503 = vpop.permute.xlu0 %502
          %v504 = vrot.slane %v503, 1
          %vm505 = vcmask 629760
          %v506 = vsel %vm505, %v503, %v504
          %v508 = vmul.f32 %v501, %v506
          %v509 = vadd.f32 %v499, %v508
          %s510 = scalar_lea.vmem [#allocation4], 49
          %v511 = vld [vmem:[%s510] ss:$8 sm:$0x3]
          %512 = vrot.lane.b32.xlu0 %v265, 76
          %v513 = vpop.permute.xlu0 %512
          %v514 = vrot.slane %v513, 1
          %vm515 = vcmask 621568
          %v516 = vsel %vm515, %v513, %v514
          %v518 = vmul.f32 %v511, %v516
          %v519 = vadd.f32 %v509, %v518
          %s520 = scalar_lea.vmem [#allocation4], 50
          %v521 = vld [vmem:[%s520] ss:$8 sm:$0x3]
          %522 = vrot.lane.b32.xlu0 %v265, 75
          %v523 = vpop.permute.xlu0 %522
          %v524 = vrot.slane %v523, 1
          %vm525 = vcmask 613376
          %v526 = vsel %vm525, %v523, %v524
          %v528 = vmul.f32 %v521, %v526
          %v529 = vadd.f32 %v519, %v528
          %s530 = scalar_lea.vmem [#allocation4], 51
          %v531 = vld [vmem:[%s530] ss:$8 sm:$0x3]
          %532 = vrot.lane.b32.xlu0 %v265, 74
          %v533 = vpop.permute.xlu0 %532
          %v534 = vrot.slane %v533, 1
          %vm535 = vcmask 605184
          %v536 = vsel %vm535, %v533, %v534
          %v538 = vmul.f32 %v531, %v536
          %v539 = vadd.f32 %v529, %v538
          %s540 = scalar_lea.vmem [#allocation4], 52
          %v541 = vld [vmem:[%s540] ss:$8 sm:$0x3]
          %542 = vrot.lane.b32.xlu0 %v265, 64
          %v543 = vpop.permute.xlu0 %542
          %v544 = vrot.slane %v543, 1
          %vm545 = vcmask 523264
          %v546 = vsel %vm545, %v543, %v544
          %v548 = vmul.f32 %v541, %v546
          %v549 = vadd.f32 %v539, %v548
          %s550 = scalar_lea.vmem [#allocation4], 53
          %v551 = vld [vmem:[%s550] ss:$8 sm:$0x3]
          %552 = vrot.lane.b32.xlu0 %v265, 63
          %v553 = vpop.permute.xlu0 %552
          %v554 = vrot.slane %v553, 1
          %vm555 = vcmask 515072
          %v556 = vsel %vm555, %v553, %v554
          %v558 = vmul.f32 %v551, %v556
          %v559 = vadd.f32 %v549, %v558
          %s560 = scalar_lea.vmem [#allocation4], 54
          %v561 = vld [vmem:[%s560] ss:$8 sm:$0x3]
          %562 = vrot.lane.b32.xlu0 %v265, 62
          %v563 = vpop.permute.xlu0 %562
          %v564 = vrot.slane %v563, 1
          %vm565 = vcmask 506880
          %v566 = vsel %vm565, %v563, %v564
          %v568 = vmul.f32 %v561, %v566
          %v569 = vadd.f32 %v559, %v568
          %s570 = scalar_lea.vmem [#allocation4], 55
          %v571 = vld [vmem:[%s570] ss:$8 sm:$0x3]
          %572 = vrot.lane.b32.xlu0 %v265, 61
          %v573 = vpop.permute.xlu0 %572
          %v574 = vrot.slane %v573, 1
          %vm575 = vcmask 498688
          %v576 = vsel %vm575, %v573, %v574
          %v578 = vmul.f32 %v571, %v576
          %v579 = vadd.f32 %v569, %v578
          %s580 = scalar_lea.vmem [#allocation4], 64
          %v581 = vld [vmem:[%s580] ss:$8 sm:$0x3]
          %582 = vrot.lane.b32.xlu0 %v265, 60
          %v583 = vpop.permute.xlu0 %582
          %v584 = vrot.slane %v583, 1
          %vm585 = vcmask 490496
          %v586 = vsel %vm585, %v583, %v584
          %v588 = vmul.f32 %v581, %v586
          %v589 = vadd.f32 %v579, %v588
          %s590 = scalar_lea.vmem [#allocation4], 65
          %v591 = vld [vmem:[%s590] ss:$8 sm:$0x3]
          %592 = vrot.lane.b32.xlu0 %v265, 59
          %v593 = vpop.permute.xlu0 %592
          %v594 = vrot.slane %v593, 1
          %vm595 = vcmask 482304
          %v596 = vsel %vm595, %v593, %v594
          %v598 = vmul.f32 %v591, %v596
          %v599 = vadd.f32 %v589, %v598
          %s600 = scalar_lea.vmem [#allocation4], 66
          %v601 = vld [vmem:[%s600] ss:$8 sm:$0x3]
          %602 = vrot.lane.b32.xlu0 %v265, 58
          %v603 = vpop.permute.xlu0 %602
          %v604 = vrot.slane %v603, 1
          %vm605 = vcmask 474112
          %v606 = vsel %vm605, %v603, %v604
          %v608 = vmul.f32 %v601, %v606
          %v609 = vadd.f32 %v599, %v608
          %s610 = scalar_lea.vmem [#allocation4], 67
          %v611 = vld [vmem:[%s610] ss:$8 sm:$0x3]
          %612 = vrot.lane.b32.xlu0 %v265, 48
          %v613 = vpop.permute.xlu0 %612
          %v614 = vrot.slane %v613, 1
          %vm615 = vcmask 392192
          %v616 = vsel %vm615, %v613, %v614
          %v618 = vmul.f32 %v611, %v616
          %v619 = vadd.f32 %v609, %v618
          %s620 = scalar_lea.vmem [#allocation4], 68
          %v621 = vld [vmem:[%s620] ss:$8 sm:$0x3]
          %622 = vrot.lane.b32.xlu0 %v265, 47
          %v623 = vpop.permute.xlu0 %622
          %v624 = vrot.slane %v623, 1
          %vm625 = vcmask 384000
          %v626 = vsel %vm625, %v623, %v624
          %v628 = vmul.f32 %v621, %v626
          %v629 = vadd.f32 %v619, %v628
          %s630 = scalar_lea.vmem [#allocation4], 69
          %v631 = vld [vmem:[%s630] ss:$8 sm:$0x3]
          %632 = vrot.lane.b32.xlu0 %v265, 46
          %v633 = vpop.permute.xlu0 %632
          %v634 = vrot.slane %v633, 1
          %vm635 = vcmask 375808
          %v636 = vsel %vm635, %v633, %v634
          %v638 = vmul.f32 %v631, %v636
          %v639 = vadd.f32 %v629, %v638
          %s640 = scalar_lea.vmem [#allocation4], 70
          %v641 = vld [vmem:[%s640] ss:$8 sm:$0x3]
          %642 = vrot.lane.b32.xlu0 %v265, 45
          %v643 = vpop.permute.xlu0 %642
          %v644 = vrot.slane %v643, 1
          %vm645 = vcmask 367616
          %v646 = vsel %vm645, %v643, %v644
          %v648 = vmul.f32 %v641, %v646
          %v649 = vadd.f32 %v639, %v648
          %s650 = scalar_lea.vmem [#allocation4], 71
          %v651 = vld [vmem:[%s650] ss:$8 sm:$0x3]
          %652 = vrot.lane.b32.xlu0 %v265, 44
          %v653 = vpop.permute.xlu0 %652
          %v654 = vrot.slane %v653, 1
          %vm655 = vcmask 359424
          %v656 = vsel %vm655, %v653, %v654
          %v658 = vmul.f32 %v651, %v656
          %v659 = vadd.f32 %v649, %v658
          %s660 = scalar_lea.vmem [#allocation4], 80
          %v661 = vld [vmem:[%s660] ss:$8 sm:$0x3]
          %662 = vrot.lane.b32.xlu0 %v265, 43
          %v663 = vpop.permute.xlu0 %662
          %v664 = vrot.slane %v663, 1
          %vm665 = vcmask 351232
          %v666 = vsel %vm665, %v663, %v664
          %v668 = vmul.f32 %v661, %v666
          %v669 = vadd.f32 %v659, %v668
          %s670 = scalar_lea.vmem [#allocation4], 81
          %v671 = vld [vmem:[%s670] ss:$8 sm:$0x3]
          %672 = vrot.lane.b32.xlu0 %v265, 42
          %v673 = vpop.permute.xlu0 %672
          %v674 = vrot.slane %v673, 1
          %vm675 = vcmask 343040
          %v676 = vsel %vm675, %v673, %v674
          %v678 = vmul.f32 %v671, %v676
          %v679 = vadd.f32 %v669, %v678
          %s680 = scalar_lea.vmem [#allocation4], 82
          %v681 = vld [vmem:[%s680] ss:$8 sm:$0x3]
          %682 = vrot.lane.b32.xlu0 %v265, 32
          %v683 = vpop.permute.xlu0 %682
          %v684 = vrot.slane %v683, 1
          %vm685 = vcmask 261120
          %v686 = vsel %vm685, %v683, %v684
          %v688 = vmul.f32 %v681, %v686
          %v689 = vadd.f32 %v679, %v688
          %s690 = scalar_lea.vmem [#allocation4], 83
          %v691 = vld [vmem:[%s690] ss:$8 sm:$0x3]
          %692 = vrot.lane.b32.xlu0 %v265, 31
          %v693 = vpop.permute.xlu0 %692
          %v694 = vrot.slane %v693, 1
          %vm695 = vcmask 252928
          %v696 = vsel %vm695, %v693, %v694
          %v698 = vmul.f32 %v691, %v696
          %v699 = vadd.f32 %v689, %v698
          %s700 = scalar_lea.vmem [#allocation4], 84
          %v701 = vld [vmem:[%s700] ss:$8 sm:$0x3]
          %702 = vrot.lane.b32.xlu0 %v265, 30
          %v703 = vpop.permute.xlu0 %702
          %v704 = vrot.slane %v703, 1
          %vm705 = vcmask 244736
          %v706 = vsel %vm705, %v703, %v704
          %v708 = vmul.f32 %v701, %v706
          %v709 = vadd.f32 %v699, %v708
          %s710 = scalar_lea.vmem [#allocation4], 85
          %v711 = vld [vmem:[%s710] ss:$8 sm:$0x3]
          %712 = vrot.lane.b32.xlu0 %v265, 29
          %v713 = vpop.permute.xlu0 %712
          %v714 = vrot.slane %v713, 1
          %vm715 = vcmask 236544
          %v716 = vsel %vm715, %v713, %v714
          %v718 = vmul.f32 %v711, %v716
          %v719 = vadd.f32 %v709, %v718
          %s720 = scalar_lea.vmem [#allocation4], 86
          %v721 = vld [vmem:[%s720] ss:$8 sm:$0x3]
          %722 = vrot.lane.b32.xlu0 %v265, 28
          %v723 = vpop.permute.xlu0 %722
          %v724 = vrot.slane %v723, 1
          %vm725 = vcmask 228352
          %v726 = vsel %vm725, %v723, %v724
          %v728 = vmul.f32 %v721, %v726
          %v729 = vadd.f32 %v719, %v728
          %s730 = scalar_lea.vmem [#allocation4], 87
          %v731 = vld [vmem:[%s730] ss:$8 sm:$0x3]
          %732 = vrot.lane.b32.xlu0 %v265, 27
          %v733 = vpop.permute.xlu0 %732
          %v734 = vrot.slane %v733, 1
          %vm735 = vcmask 220160
          %v736 = vsel %vm735, %v733, %v734
          %v738 = vmul.f32 %v731, %v736
          %v739 = vadd.f32 %v729, %v738
          %s740 = scalar_lea.vmem [#allocation4], 96
          %v741 = vld [vmem:[%s740] ss:$8 sm:$0x3]
          %742 = vrot.lane.b32.xlu0 %v265, 26
          %v743 = vpop.permute.xlu0 %742
          %v744 = vrot.slane %v743, 1
          %vm745 = vcmask 211968
          %v746 = vsel %vm745, %v743, %v744
          %v748 = vmul.f32 %v741, %v746
          %v749 = vadd.f32 %v739, %v748
          %v750 = vxor.u32 %v749, 2147483648
          %v751 = vmul.f32 %v750, 1.442695
          %v752 = vpow.pop %v751
          %v753 = vadd.f32 %v752, 1.0
          %v754 = vrcp.pop %v753
          %v755 = vmul.f32 1.0, %v754
          %756 = vst.msk [vmem:[%s190] sm:$0x3] %vm242, %v755
        $region44: #{tpu_custom_call.1} parent=27 // pred_fallthru
          _
        %s757 = sand.u32 %s89, 1
        %s758 = scalar_lea.sflag [#allocation6], %s757
        %s759 = sand.u32 %s89, 1
        %s760 = smul.addr %s759, 2
        %s761 = scalar_lea.vmem [#allocation9], %s760
        // Predicated region
        $region45: #{tpu_custom_call.1} parent=27 // pred_check
          %p762 = pneg %p99
        $region46: #{tpu_custom_call.1} parent=27 // pred_check_branch
          %764 = sbr.rel (%p762) target = $region48
        $region47: #{tpu_custom_call.1} parent=27 // pred_region
          %s766 = ssub.s32 32, 32
          %767 = vsyncadd %s758, %s766
          %s768 = smul.addr %s24, 2
          %s769 = smul.addr %s768, 16
          %s770 = scalar_lea.hbm %s2, %s769
          %s772 = sshll.u32 %s761, 4
          %s773 = int_to_ptr.vmem [resolvable:$true] %s772
          %775 = dma.vmem_to_hbm [thread:$0]  %s773, 32, %s770, %s758
        $region48: #{tpu_custom_call.1} parent=27 // pred_fallthru
          _
      $region28: #{tpu_custom_call.1} parent=5 // pred_fallthru
        _
      %p776 = scmp.le.s32.totalorder 2, %s15
      // Predicated region
      $region49: #{tpu_custom_call.1} parent=5 // pred_check
        %p777 = pneg %p776
      $region50: #{tpu_custom_call.1} parent=5 // pred_check_branch
        %779 = sbr.rel (%p777) target = $region52
      $region51: #{tpu_custom_call.1} parent=5 // pred_region
        %s780 = ssub.s32 %s15, 2
        // Predicated region
        $region53: #{tpu_custom_call.1} parent=51 // pred_check
          %p781 = pneg %p105
        $region54: #{tpu_custom_call.1} parent=51 // pred_check_branch
          %783 = sbr.rel (%p781) target = $region56
        $region55: #{tpu_custom_call.1} parent=51 // pred_region
          %s784 = sand.u32 %s90, 1
          %s785 = scalar_lea.sflag [#allocation6], %s784
          %s786 = sand.u32 %s90, 1
          %s787 = smul.addr %s786, 2
          %s788 = scalar_lea.vmem [#allocation9], %s787
          %789 = dma.done %s785, 32
        $region56: #{tpu_custom_call.1} parent=51 // pred_fallthru
          _
      $region52: #{tpu_custom_call.1} parent=5 // pred_fallthru
        _
    $region6: #{tpu_custom_call.1} parent=1 // loop_footer
      %s19 = sadd.s32 1, %s15
    $region7: #{tpu_custom_call.1} parent=1 // loop_footer_branch
      %14 = sbr.rel target = $region3
    $region8: #{tpu_custom_call.1} parent=1 // loop_exit
      _
    %790 = vsyncpa [#allocation5], 1
    %s791 = scalar_lea.sflag [#allocation5], 1
    %792 = vsyncpa %s791, 1
    %793 = vsyncpa [#allocation8], 1
    %s794 = scalar_lea.sflag [#allocation8], 1
    %795 = vsyncpa %s794, 1
    %796 = vsyncpa [#allocation6], 1
    %s797 = scalar_lea.sflag [#allocation6], 1
    %798 = vsyncpa %s797, 1

</llo_original>
